<compile_context>
chip_gen: v6e
topology: v6e:2x2x1
jax: 0.10.0
libtpu: 0.0.40
codegen_flags: <defaults>
</compile_context>

<pallas_src>
import functools

import jax
import jax.numpy as jnp
from jax.experimental import pallas as pl
from jax.experimental.pallas import tpu as pltpu


# Tile caps (safe on v5e/v6e/v7x; bf16 double-buffered tiles << 32 MiB scoped VMEM).
_TM_MAX = 128   # batch tile     (sublanes)
_TN_MAX = 256   # class tile     (lanes)
_TK_MAX = 512   # reduction tile


def _round_up(x, m):
    return ((x + m - 1) // m) * m


def _choose_tile(dim, max_tile, align):
    """Largest tile <= max_tile; small dims round up to the layout alignment."""
    if dim >= max_tile:
        return max_tile
    return _round_up(dim, align)


def _fused_linear_kernel(x_ref, w_ref, b_ref, o_ref, acc_ref):
    """One (tm, tn) output tile; reduction over D runs on the last grid axis.

    x_ref  : [tm, tk]  bf16 flattened pixels
    w_ref  : [tk, tn]  bf16 (rescale-folded, K-padded) classifier weight
    b_ref  : [1,  tn]  f32 (rescale-folded, K-padded) bias
    o_ref  : [tm, tn]  f32 logits
    acc_ref: [tm, tn]  f32 VMEM accumulator (persists across the D axis)
    """
    @pl.when(pl.program_id(2) == 0)
    def _init():
        acc_ref[...] = jnp.zeros_like(acc_ref)

    acc_ref[...] += jnp.dot(x_ref[...], w_ref[...],
                            preferred_element_type=jnp.float32)

    @pl.when(pl.program_id(2) == pl.num_programs(2) - 1)
    def _finalize():
        o_ref[...] = (acc_ref[...] + b_ref[...]).astype(o_ref.dtype)


def prepare_classifier_params(weight, bias, *, natural_pixels,
                              compute_dtype=jnp.bfloat16):
    """One-time parameter prep (call once at init, reuse across forwards).

    Folds ClassifierBase's natural-pixels rescale into the linear classifier
    in f32:  classifier(x*2 - 1) == x @ (2W) + (b - sum_d W).
    Pads K up to a lane-dense multiple of 128 and D up to the reduction tile,
    then casts the weight to the MXU compute dtype (bias stays f32).
    """
    D, K = weight.shape
    w = weight.astype(jnp.float32)
    b = bias.astype(jnp.float32)
    if natural_pixels:
        b = b - jnp.sum(w, axis=0)   # fold done in f32 before any downcast
        w = 2.0 * w

    tn = _choose_tile(K, _TN_MAX, 128)
    tk = _choose_tile(D, _TK_MAX, 128)
    Kp = _round_up(K, tn)
    Dp = _round_up(D, tk)

    w = jnp.pad(w, ((0, Dp - D), (0, Kp - K)))          # zero pad: contributes 0
    b = jnp.pad(b, ((0, Kp - K),)).reshape(1, Kp)
    return w.astype(compute_dtype), b


@functools.partial(jax.jit, static_argnames=("num_classes",))
def classifier_base_forward(x_nchw, w_prepared, b_prepared, num_classes):
    """ClassifierBase.forward with the synthetic (prepared) linear classifier.

    x_nchw     : [B, C, H, W] float32, pixels in [0, 1]
    w_prepared : [Dp, Kp] (rescale-folded, padded) weight in compute dtype
    b_prepared : [1, Kp]  f32 bias
    returns    : [B, num_classes] float32 logits
    """
    B = x_nchw.shape[0]
    D = x_nchw.shape[1] * x_nchw.shape[2] * x_nchw.shape[3]
    Dp, Kp = w_prepared.shape
    assert Dp >= D and Kp >= num_classes

    # Re-derive tiles (deterministic given the padded shapes).
    tm = _choose_tile(B, _TM_MAX, 8)
    tn = _choose_tile(Kp, _TN_MAX, 128)
    tk = _choose_tile(Dp, _TK_MAX, 128)
    Bp = _round_up(B, tm)
    assert Dp % tk == 0 and Kp % tn == 0

    # Glue (fused by jit): flatten NCHW -> [B, D] (== torch x.flatten(1)),
    # cast to compute dtype, zero-pad to the padded tile grid.
    x = x_nchw.reshape(B, D).astype(w_prepared.dtype)
    x = jnp.pad(x, ((0, Bp - B), (0, Dp - D)))

    grid = (Bp // tm, Kp // tn, Dp // tk)   # reduction axis last

    flops = 2 * Bp * Kp * Dp
    bytes_accessed = (Bp * Dp + Dp * Kp) * 2 + Kp * 4 + Bp * Kp * 4

    out = pl.pallas_call(
        _fused_linear_kernel,
        out_shape=jax.ShapeDtypeStruct((Bp, Kp), jnp.float32),
        grid=grid,
        in_specs=[
            pl.BlockSpec((tm, tk), lambda i, j, k: (i, k)),   # x
            pl.BlockSpec((tk, tn), lambda i, j, k: (k, j)),   # W
            pl.BlockSpec((1, tn), lambda i, j, k: (0, j)),    # bias
        ],
        out_specs=pl.BlockSpec((tm, tn), lambda i, j, k: (i, j)),
        scratch_shapes=[pltpu.VMEM((tm, tn), jnp.float32)],
        compiler_params=pltpu.CompilerParams(
            dimension_semantics=("parallel", "parallel", "arbitrary"),
            vmem_limit_bytes=32 * 1024 * 1024,
        ),
        cost_estimate=pl.CostEstimate(
            flops=flops, transcendentals=0, bytes_accessed=bytes_accessed),
    )(x, w_prepared, b_prepared)

    return out[:B, :num_classes]


if __name__ == "__main__":
    key = jax.random.PRNGKey(0)
    kx, kw, kb = jax.random.split(key, 3)

    # Small shapes consistent with an image classifier input.
    B, C, H, W = 2, 4, 16, 16
    D = C * H * W
    K = 8  # num_classes for the synthetic classifier
    natural_pixels = True

    # Pixels in [0, 1], as ClassifierBase expects.
    x = jax.random.uniform(kx, (B, C, H, W), dtype=jnp.float32)
    # Deterministic synthetic classifier parameters.
    weight = jax.random.normal(kw, (D, K), dtype=jnp.float32) * 0.02
    bias = jax.random.normal(kb, (K,), dtype=jnp.float32) * 0.1

    # One-time parameter prep (rescale fold + pad + bf16 cast).
    w_prep, b_prep = prepare_classifier_params(
        weight, bias, natural_pixels=natural_pixels,
        compute_dtype=jnp.bfloat16)

    logits = classifier_base_forward(x, w_prep, b_prep, num_classes=K)
    jax.block_until_ready(logits)

    # Reference: exact ClassifierBase semantics in f32
    # (tolerance accounts for bf16 operands with f32 accumulation).
    x_in = x * 2.0 - 1.0 if natural_pixels else x
    ref = x_in.reshape(B, D) @ weight + bias
    assert logits.shape == (B, K)
    assert jnp.allclose(logits, ref, atol=2e-2, rtol=2e-2), (
        float(jnp.max(jnp.abs(logits - ref))))

    print("KERNEL_OK")
</pallas_src>

<mosaic_0001>
module attributes {stable_mosaic.version = 11 : i64} {
  func.func @_fused_linear_kernel(%arg0: i32, %arg1: i32, %arg2: i32, %arg3: memref<8x512xbf16, #tpu.memory_space<vmem>>, %arg4: memref<512x128xbf16, #tpu.memory_space<vmem>>, %arg5: memref<1x128xf32, #tpu.memory_space<vmem>>, %arg6: memref<8x128xf32, #tpu.memory_space<vmem>>, %arg7: memref<8x128xf32, #tpu.memory_space<vmem>>) attributes {dimension_semantics = [#tpu.dimension_semantics<parallel>, #tpu.dimension_semantics<parallel>, #tpu.dimension_semantics<arbitrary>], iteration_bounds = array<i64: 1, 1, 2>, scalar_prefetch = 0 : i64, scratch_operands = 1 : i64, tpu.core_type = #tpu.core_type<tc>, window_params = [{transform_indices = @transform_0, window_bounds = array<i64: 8, 512>}, {transform_indices = @transform_1, window_bounds = array<i64: 512, 128>}, {transform_indices = @transform_2, window_bounds = array<i64: 1, 128>}, {transform_indices = @transform_3, window_bounds = array<i64: 8, 128>}]} {
    %c0_i32 = arith.constant 0 : i32
    %0 = arith.cmpi eq, %arg2, %c0_i32 : i32
    %1 = arith.extui %0 : i1 to i32
    %c0_i32_0 = arith.constant 0 : i32
    %2 = arith.cmpi ne, %1, %c0_i32_0 : i32
    scf.if %2 {
      %cst_9 = arith.constant 0.000000e+00 : f32
      %12 = vector.broadcast %cst_9 : f32 to vector<8x128xf32>
      %c0_10 = arith.constant 0 : index
      %c0_11 = arith.constant 0 : index
      %13 = vector.load %arg7[%c0_10, %c0_11] : memref<8x128xf32, #tpu.memory_space<vmem>>, vector<8x128xf32>
      tpu.vector_store %arg7[%c0_10, %c0_11], %12 {strides = array<i32>} : memref<8x128xf32, #tpu.memory_space<vmem>>, vector<8x128xf32>,
    } else {
    }
    %c0 = arith.constant 0 : index
    %c0_1 = arith.constant 0 : index
    %3 = vector.load %arg7[%c0, %c0_1] : memref<8x128xf32, #tpu.memory_space<vmem>>, vector<8x128xf32>
    %c0_2 = arith.constant 0 : index
    %c0_3 = arith.constant 0 : index
    %4 = vector.load %arg3[%c0_2, %c0_3] : memref<8x512xbf16, #tpu.memory_space<vmem>>, vector<8x512xbf16>
    %c0_4 = arith.constant 0 : index
    %c0_5 = arith.constant 0 : index
    %5 = vector.load %arg4[%c0_4, %c0_5] : memref<512x128xbf16, #tpu.memory_space<vmem>>, vector<512x128xbf16>
    %cst = arith.constant dense<0.000000e+00> : vector<8x128xf32>
    %6 = tpu.matmul %4, %5, %cst {dimension_numbers = #tpu.dot_dimension_numbers<[1], [0], [0], [1], [0, 0, 1, 1], [], []>} : vector<8x512xbf16>, vector<512x128xbf16>, vector<8x128xf32> -> vector<8x128xf32>
    %7 = arith.addf %3, %6 : vector<8x128xf32>
    %c0_6 = arith.constant 0 : index
    %c0_7 = arith.constant 0 : index
    %8 = vector.load %arg7[%c0_6, %c0_7] : memref<8x128xf32, #tpu.memory_space<vmem>>, vector<8x128xf32>
    tpu.vector_store %arg7[%c0_6, %c0_7], %7 {strides = array<i32>} : memref<8x128xf32, #tpu.memory_space<vmem>>, vector<8x128xf32>,
    %c1_i32 = arith.constant 1 : i32
    %9 = arith.cmpi eq, %arg2, %c1_i32 : i32
    %10 = arith.extui %9 : i1 to i32
    %c0_i32_8 = arith.constant 0 : i32
    %11 = arith.cmpi ne, %10, %c0_i32_8 : i32
    scf.if %11 {
      %c0_9 = arith.constant 0 : index
      %c0_10 = arith.constant 0 : index
      %12 = vector.load %arg7[%c0_9, %c0_10] : memref<8x128xf32, #tpu.memory_space<vmem>>, vector<8x128xf32>
      %c0_11 = arith.constant 0 : index
      %c0_12 = arith.constant 0 : index
      %13 = vector.load %arg5[%c0_11, %c0_12] : memref<1x128xf32, #tpu.memory_space<vmem>>, vector<1x128xf32>
      %14 = vector.broadcast %13 : vector<1x128xf32> to vector<8x128xf32>
      %15 = arith.addf %12, %14 : vector<8x128xf32>
      %c0_13 = arith.constant 0 : index
      %c0_14 = arith.constant 0 : index
      %16 = vector.load %arg6[%c0_13, %c0_14] : memref<8x128xf32, #tpu.memory_space<vmem>>, vector<8x128xf32>
      tpu.vector_store %arg6[%c0_13, %c0_14], %15 {strides = array<i32>} : memref<8x128xf32, #tpu.memory_space<vmem>>, vector<8x128xf32>,
    } else {
    }
    return
  }
  func.func @transform_0(%arg0: i32, %arg1: i32, %arg2: i32) -> (i32, i32) {
    %c0_i32 = arith.constant 0 : i32
    return %arg0, %arg2 : i32, i32
  }
  func.func @transform_1(%arg0: i32, %arg1: i32, %arg2: i32) -> (i32, i32) {
    %c0_i32 = arith.constant 0 : i32
    return %arg2, %arg1 : i32, i32
  }
  func.func @transform_2(%arg0: i32, %arg1: i32, %arg2: i32) -> (i32, i32) {
    %c0_i32 = arith.constant 0 : i32
    %c0_i32_0 = arith.constant 0 : i32
    return %c0_i32, %arg1 : i32, i32
  }
  func.func @transform_3(%arg0: i32, %arg1: i32, %arg2: i32) -> (i32, i32) {
    %c0_i32 = arith.constant 0 : i32
    return %arg0, %arg1 : i32, i32
  }
}

</mosaic_0001>

<llo_original>
// kernel: classifier_base_forward.1
$region0: #{classifier_base_forward.1}
  #allocation0 [shape = 'u32[]', space=smem, size = 0x4, offset = 0x4, fixed_abs, tag = 'smem constant byte address 0x4 - core index']
  #allocation1 [shape = 'u32[144,128]{1,0:T(1,128)}', space=vmem, size = 0x12000, scoped, tag = 'internal scratch']
  #allocation2 [shape = 'f32[8,128]{1,0:T(8,128)}', space=vmem, size = 0x1000, scoped, tag = 'scratch operand']
  %s0 = inlined_call_operand.vmem [shape: bf16[8,1024], index: 0, kind: input, shape index: {}]
  %s1 = inlined_call_operand.hbm [shape: bf16[1024,128], index: 1, kind: input, shape index: {}]
  %s2 = inlined_call_operand.vmem [shape: f32[1,128], index: 2, kind: input, shape index: {}]
  %s3 = inlined_call_operand.vmem [shape: f32[8,128], index: 3, kind: output, shape index: {}]
  %s4 = sld [smem:[#allocation0]]
  $region57: #{classifier_base_forward.1} parent=0
    _
  %s6 = ssub.s32 1, %s4
  %s7 = scalar_select 0, %s6, %s4
  $region1: #{classifier_base_forward.1} parent=0
    #allocation3 [shape = 'u8[262144]{0}', space=vmem, size = 0x40000, scoped, tag = 'input window, operand 1']
    #allocation4 [shape = 's32[2]{0}', space=sflag, size = 0x8, scoped, tag = 'scoped memory for classifier_base_forward.1']
    %8 = vsyncpa [#allocation4], 0
    %s9 = scalar_lea.sflag [#allocation4], 1
    %10 = vsyncpa %s9, 0
    loop: start=0, step=1, limit=4
    $region2: #{classifier_base_forward.1} parent=1 // loop_pre_header
      _
    $region3: #{classifier_base_forward.1} parent=1 // loop_header
      %s12 = sphi 0, %s16
      %p13 = scmp.ge.s32.totalorder %s12, 4
      %s19 = sphi 0, %s38
      %s20 = sphi 0, %s34
      %s21 = sphi 0, %s30
      %s22 = sphi 0, %s19
      %s23 = sphi 0, %s20
      %s24 = sphi 0, %s21
      %s25 = sphi 0, %s22
      %s26 = sphi 0, %s23
      %s27 = sphi 0, %s24
      %s43 = sphi 0, %s45
      %s46 = sphi 0, %s43
      %s47 = sphi 0, %s46
      %s63 = sphi 0, %s47
      %s71 = sphi 0, %s73
      %s74 = sphi 0, %s71
      %s75 = sphi 0, %s74
      %s91 = sphi 0, %s75
      %s97 = sphi 0, %s99
      %s100 = sphi 0, %s97
      %s101 = sphi 0, %s100
      %s117 = sphi 0, %s101
      %s125 = sphi 0, %s127
      %s128 = sphi 0, %s125
      %s129 = sphi 0, %s128
      %s145 = sphi 0, %s129
    $region4: #{classifier_base_forward.1} parent=1 // loop_header_branch
      %15 = sbr.rel (%p13) target = $region8
    $region5: #{classifier_base_forward.1} parent=1 // loop_body
      %s17 = ssub.s32 %s12, 1
      %s18 = ssub.s32 %s12, 2
      %s28 = sadd.s32 1, %s21
      %p29 = scmp.ge.s32.totalorder %s28, 2
      %s30 = scalar_select %p29, 0, %s28
      %s31 = sadd.s32 1, %s20
      %s32 = scalar_select %p29, %s31, %s20
      %p33 = scmp.ge.s32.totalorder %s32, 1
      %s34 = scalar_select %p33, 0, %s32
      %s35 = sadd.s32 1, %s19
      %s36 = scalar_select %p33, %s35, %s19
      %p37 = scmp.ge.s32.totalorder %s36, 1
      %s38 = scalar_select %p37, 0, %s36
      %s39 = ssub.s32 %s19, %s38
      %s40 = ssub.s32 %s21, %s30
      %s41 = sor.u32 %s39, %s40
      %p42 = scmp.eq.s32.totalorder %s41, 0
      %s44 = sadd.s32 %s43, 1
      %s45 = scalar_select %p42, %s43, %s44
      %p48 = pneg %p42
      %p49 = scmp.eq.s32.totalorder %s12, 1
      %p50 = por %p48, %p49
      %p51 = scmp.ne.s32.totalorder %s43, %s46
      %p52 = scmp.eq.s32.totalorder %s12, 0
      %p53 = por %p51, %p52
      %p54 = scmp.ne.s32.totalorder %s43, %s46
      %p55 = scmp.eq.s32.totalorder %s17, 1
      %p56 = por %p54, %p55
      %p57 = scmp.ne.s32.totalorder %s46, %s47
      %p58 = scmp.eq.s32.totalorder %s17, 0
      %p59 = por %p57, %p58
      %p60 = scmp.ne.s32.totalorder %s46, %s47
      %p61 = scmp.eq.s32.totalorder %s18, 1
      %p62 = por %p60, %p61
      %p64 = scmp.ne.s32.totalorder %s47, %s63
      %p65 = scmp.eq.s32.totalorder %s18, 0
      %p66 = por %p64, %p65
      %s67 = ssub.s32 %s21, %s30
      %s68 = ssub.s32 %s20, %s34
      %s69 = sor.u32 %s67, %s68
      %p70 = scmp.eq.s32.totalorder %s69, 0
      %s72 = sadd.s32 %s71, 1
      %s73 = scalar_select %p70, %s71, %s72
      %p76 = pneg %p70
      %p77 = scmp.eq.s32.totalorder %s12, 1
      %p78 = por %p76, %p77
      %p79 = scmp.ne.s32.totalorder %s71, %s74
      %p80 = scmp.eq.s32.totalorder %s12, 0
      %p81 = por %p79, %p80
      %p82 = scmp.ne.s32.totalorder %s71, %s74
      %p83 = scmp.eq.s32.totalorder %s17, 1
      %p84 = por %p82, %p83
      %p85 = scmp.ne.s32.totalorder %s74, %s75
      %p86 = scmp.eq.s32.totalorder %s17, 0
      %p87 = por %p85, %p86
      %p88 = scmp.ne.s32.totalorder %s74, %s75
      %p89 = scmp.eq.s32.totalorder %s18, 1
      %p90 = por %p88, %p89
      %p92 = scmp.ne.s32.totalorder %s75, %s91
      %p93 = scmp.eq.s32.totalorder %s18, 0
      %p94 = por %p92, %p93
      %s95 = ssub.s32 %s20, %s34
      %p96 = scmp.eq.s32.totalorder %s95, 0
      %s98 = sadd.s32 %s97, 1
      %s99 = scalar_select %p96, %s97, %s98
      %p102 = pneg %p96
      %p103 = scmp.eq.s32.totalorder %s12, 1
      %p104 = por %p102, %p103
      %p105 = scmp.ne.s32.totalorder %s97, %s100
      %p106 = scmp.eq.s32.totalorder %s12, 0
      %p107 = por %p105, %p106
      %p108 = scmp.ne.s32.totalorder %s97, %s100
      %p109 = scmp.eq.s32.totalorder %s17, 1
      %p110 = por %p108, %p109
      %p111 = scmp.ne.s32.totalorder %s100, %s101
      %p112 = scmp.eq.s32.totalorder %s17, 0
      %p113 = por %p111, %p112
      %p114 = scmp.ne.s32.totalorder %s100, %s101
      %p115 = scmp.eq.s32.totalorder %s18, 1
      %p116 = por %p114, %p115
      %p118 = scmp.ne.s32.totalorder %s101, %s117
      %p119 = scmp.eq.s32.totalorder %s18, 0
      %p120 = por %p118, %p119
      %s121 = ssub.s32 %s19, %s38
      %s122 = ssub.s32 %s20, %s34
      %s123 = sor.u32 %s121, %s122
      %p124 = scmp.eq.s32.totalorder %s123, 0
      %s126 = sadd.s32 %s125, 1
      %s127 = scalar_select %p124, %s125, %s126
      %p130 = pneg %p124
      %p131 = scmp.eq.s32.totalorder %s12, 1
      %p132 = por %p130, %p131
      %p133 = scmp.ne.s32.totalorder %s125, %s128
      %p134 = scmp.eq.s32.totalorder %s12, 0
      %p135 = por %p133, %p134
      %p136 = scmp.ne.s32.totalorder %s125, %s128
      %p137 = scmp.eq.s32.totalorder %s17, 1
      %p138 = por %p136, %p137
      %p139 = scmp.ne.s32.totalorder %s128, %s129
      %p140 = scmp.eq.s32.totalorder %s17, 0
      %p141 = por %p139, %p140
      %p142 = scmp.ne.s32.totalorder %s128, %s129
      %p143 = scmp.eq.s32.totalorder %s18, 1
      %p144 = por %p142, %p143
      %p146 = scmp.ne.s32.totalorder %s129, %s145
      %p147 = scmp.eq.s32.totalorder %s18, 0
      %p148 = por %p146, %p147
      %p149 = scmp.le.s32.totalorder 1, %s12
      %p150 = scmp.lt.s32.totalorder %s12, 3
      %p151 = pnand %p149, %p150
      %p152 = pneg %p151
      // Predicated region
      $region9: #{classifier_base_forward.1} parent=5 // pred_check
        _
      $region10: #{classifier_base_forward.1} parent=5 // pred_check_branch
        %154 = sbr.rel (%p151) target = $region12
      $region11: #{classifier_base_forward.1} parent=5 // pred_region
        %s155 = ssub.s32 %s12, 1
        // Predicated region
        $region13: #{classifier_base_forward.1} parent=11 // pred_check
          %p156 = pneg %p113
        $region14: #{classifier_base_forward.1} parent=11 // pred_check_branch
          %158 = sbr.rel (%p156) target = $region16
        $region15: #{classifier_base_forward.1} parent=11 // pred_region
          %p159 = scmp.lt.s32.totalorder %s23, 0
          %s160 = scalar_select %p159, %s23, 0
          %s161 = scalar_lea.vmem %s2, %s160
        $region16: #{classifier_base_forward.1} parent=11 // pred_fallthru
          _
      $region12: #{classifier_base_forward.1} parent=5 // pred_fallthru
        _
      %p162 = scmp.lt.s32.totalorder %s12, 2
      // Predicated region
      $region17: #{classifier_base_forward.1} parent=5 // pred_check
        %p163 = pneg %p162
      $region18: #{classifier_base_forward.1} parent=5 // pred_check_branch
        %165 = sbr.rel (%p163) target = $region20
      $region19: #{classifier_base_forward.1} parent=5 // pred_region
        // Predicated region
        $region21: #{classifier_base_forward.1} parent=19 // pred_check
          %p166 = pneg %p53
        $region22: #{classifier_base_forward.1} parent=19 // pred_check_branch
          %168 = sbr.rel (%p166) target = $region24
        $region23: #{classifier_base_forward.1} parent=19 // pred_region
          %s169 = smul.u32 4, %s21
          %p170 = scmp.lt.s32.totalorder %s19, 0
          %s171 = scalar_select %p170, %s19, 0
          %p172 = scmp.lt.s32.totalorder %s169, 7
          %s173 = scalar_select %p172, %s169, 7
          %s174 = smul.addr %s171, 8
          %s175 = sadd.s32 %s173, %s174
          %s176 = smul.addr %s175, 4
          %s177 = scalar_lea.vmem %s0, %s176
          %s178 = smul.u32 4, %s21
        $region24: #{classifier_base_forward.1} parent=19 // pred_fallthru
          _
        // Predicated region
        $region25: #{classifier_base_forward.1} parent=19 // pred_check
          %p179 = pneg %p81
        $region26: #{classifier_base_forward.1} parent=19 // pred_check_branch
          %181 = sbr.rel (%p179) target = $region28
        $region27: #{classifier_base_forward.1} parent=19 // pred_region
          %s182 = sand.u32 %s71, 1
          %s183 = scalar_lea.sflag [#allocation4], %s182
          %s184 = sand.u32 %s71, 1
          %s185 = smul.addr %s184, 256
          %s186 = scalar_lea.vmem [#allocation3], %s185
          %s187 = smul.u32 64, %s21
          %s189 = ssub.s32 4096, 4096
          %190 = vsyncadd %s183, %s189
          %s191 = sadd.s32 %s20, %s187
          %s192 = smul.addr %s191, 64
          %s193 = scalar_lea.hbm %s1, %s192
          %s194 = sshll.u32 %s186, 4
          %s195 = int_to_ptr.vmem [resolvable:$true] %s194
          %200 = dma.hbm_to_vmem [thread:$0]  %s193, 4096, %s195, %s183, 64, 64, 4
        $region28: #{classifier_base_forward.1} parent=19 // pred_fallthru
          _
      $region20: #{classifier_base_forward.1} parent=5 // pred_fallthru
        _
      %p201 = scmp.le.s32.totalorder 1, %s12
      %p202 = scmp.lt.s32.totalorder %s12, 3
      %p203 = pnand %p201, %p202
      %p204 = pneg %p203
      // Predicated region
      $region29: #{classifier_base_forward.1} parent=5 // pred_check
        _
      $region30: #{classifier_base_forward.1} parent=5 // pred_check_branch
        %206 = sbr.rel (%p203) target = $region32
      $region31: #{classifier_base_forward.1} parent=5 // pred_region
        %s207 = ssub.s32 %s12, 1
        %s208 = sand.u32 %s74, 1
        %s209 = scalar_lea.sflag [#allocation4], %s208
        %s210 = sand.u32 %s74, 1
        %s211 = smul.addr %s210, 256
        %s212 = scalar_lea.vmem [#allocation3], %s211
        // Predicated region
        $region33: #{classifier_base_forward.1} parent=31 // pred_check
          %p213 = pneg %p87
        $region34: #{classifier_base_forward.1} parent=31 // pred_check_branch
          %215 = sbr.rel (%p213) target = $region36
        $region35: #{classifier_base_forward.1} parent=31 // pred_region
          %216 = dma.done %s209, 4096
        $region36: #{classifier_base_forward.1} parent=31 // pred_fallthru
          _
        %s217 = smul.u32 4, %s24
        %p218 = scmp.lt.s32.totalorder %s22, 0
        %s219 = scalar_select %p218, %s22, 0
        %p220 = scmp.lt.s32.totalorder %s217, 7
        %s221 = scalar_select %p220, %s217, 7
        %s222 = smul.addr %s219, 8
        %s223 = sadd.s32 %s221, %s222
        %s224 = smul.addr %s223, 4
        %s225 = scalar_lea.vmem %s0, %s224
        %p226 = pneg %p59
        %p227 = pneg %p56
        %s228 = sand.u32 %s74, 1
        %s229 = scalar_lea.sflag [#allocation4], %s228
        %s230 = sand.u32 %s74, 1
        %s231 = smul.addr %s230, 256
        %s232 = scalar_lea.vmem [#allocation3], %s231
        %p233 = pneg %p87
        %p234 = pneg %p84
        %p235 = scmp.lt.s32.totalorder %s23, 0
        %s236 = scalar_select %p235, %s23, 0
        %s237 = scalar_lea.vmem %s2, %s236
        %p238 = pneg %p113
        %p239 = pneg %p110
        %p240 = pneg %p141
        %p241 = pneg %p138
        %p242 = scmp.lt.s32.totalorder %s22, 0
        %s243 = scalar_select %p242, %s22, 0
        %p244 = scmp.lt.s32.totalorder %s23, 0
        %s245 = scalar_select %p244, %s23, 0
        %s246 = sadd.s32 %s245, %s243
        %s247 = smul.addr %s246, 8
        %s248 = scalar_lea.vmem %s3, %s247
        %s249 = smul.u32 4, %s24
        %p250 = scmp.lt.s32.totalorder %s22, 0
        %s251 = scalar_select %p250, %s22, 0
        %p252 = scmp.lt.s32.totalorder %s249, 7
        %s253 = scalar_select %p252, %s249, 7
        %s254 = smul.addr %s251, 8
        %s255 = sadd.s32 %s253, %s254
        %s256 = smul.addr %s255, 4
        %s257 = scalar_lea.vmem %s0, %s256
        %s258 = smul.u32 4, %s24
        %s259 = smul.u32 64, %s24
        %p260 = scmp.lt.s32.totalorder %s23, 0
        %s261 = scalar_select %p260, %s23, 0
        %s262 = scalar_lea.vmem %s2, %s261
        %p263 = scmp.lt.s32.totalorder %s22, 0
        %s264 = scalar_select %p263, %s22, 0
        %p265 = scmp.lt.s32.totalorder %s23, 0
        %s266 = scalar_select %p265, %s23, 0
        %s267 = sadd.s32 %s266, %s264
        %s268 = smul.addr %s267, 8
        %s269 = scalar_lea.vmem %s3, %s268
        %p271 = scmp.eq.s32.totalorder %s24, 0
        // Predicated region
        $region37: #{classifier_base_forward.1} parent=31 // pred_check
          %p272 = pneg %p271
        $region38: #{classifier_base_forward.1} parent=31 // pred_check_branch
          %274 = sbr.rel (%p272) target = $region40
        $region39: #{classifier_base_forward.1} parent=31 // pred_region
          %275 = vst [vmem:[#allocation2] sm:$0xff] 0.0
        $region40: #{classifier_base_forward.1} parent=31 // pred_fallthru
          _
        %v276 = vld [vmem:[#allocation2] sm:$0xff]
        %v277 = vld [vmem:[%s257] sm:$0xff]
        %v278 = vld [vmem:[%s257 + $0x8] sm:$0xff]
        %v279 = vld [vmem:[%s212] sm:$0xf]
        %v280 = vld [vmem:[%s212 + $0x4] sm:$0xf]
        %v281 = vld [vmem:[%s212 + $0x8] sm:$0xf]
        %v282 = vld [vmem:[%s212 + $0xc] sm:$0xf]
        %v283 = vld [vmem:[%s212 + $0x10] sm:$0xf]
        %v284 = vld [vmem:[%s212 + $0x14] sm:$0xf]
        %v285 = vld [vmem:[%s212 + $0x18] sm:$0xf]
        %v286 = vld [vmem:[%s212 + $0x1c] sm:$0xf]
        %v287 = vld [vmem:[%s212 + $0x20] sm:$0xf]
        %v288 = vld [vmem:[%s212 + $0x24] sm:$0xf]
        %v289 = vld [vmem:[%s212 + $0x28] sm:$0xf]
        %v290 = vld [vmem:[%s212 + $0x2c] sm:$0xf]
        %v291 = vld [vmem:[%s212 + $0x30] sm:$0xf]
        %v292 = vld [vmem:[%s212 + $0x34] sm:$0xf]
        %v293 = vld [vmem:[%s212 + $0x38] sm:$0xf]
        %v294 = vld [vmem:[%s212 + $0x3c] sm:$0xf]
        %v295 = vld [vmem:[%s212 + $0x40] sm:$0xf]
        %v296 = vld [vmem:[%s212 + $0x44] sm:$0xf]
        %v297 = vld [vmem:[%s212 + $0x48] sm:$0xf]
        %v298 = vld [vmem:[%s212 + $0x4c] sm:$0xf]
        %v299 = vld [vmem:[%s212 + $0x50] sm:$0xf]
        %v300 = vld [vmem:[%s212 + $0x54] sm:$0xf]
        %v301 = vld [vmem:[%s212 + $0x58] sm:$0xf]
        %v302 = vld [vmem:[%s212 + $0x5c] sm:$0xf]
        %v303 = vld [vmem:[%s212 + $0x60] sm:$0xf]
        %v304 = vld [vmem:[%s212 + $0x64] sm:$0xf]
        %v305 = vld [vmem:[%s212 + $0x68] sm:$0xf]
        %v306 = vld [vmem:[%s212 + $0x6c] sm:$0xf]
        %v307 = vld [vmem:[%s212 + $0x70] sm:$0xf]
        %v308 = vld [vmem:[%s212 + $0x74] sm:$0xf]
        %v309 = vld [vmem:[%s212 + $0x78] sm:$0xf]
        %v310 = vld [vmem:[%s212 + $0x7c] sm:$0xf]
        %v311 = vld [vmem:[%s212 + $0x80] sm:$0xf]
        %v312 = vld [vmem:[%s212 + $0x84] sm:$0xf]
        %v313 = vld [vmem:[%s212 + $0x88] sm:$0xf]
        %v314 = vld [vmem:[%s212 + $0x8c] sm:$0xf]
        %v315 = vld [vmem:[%s212 + $0x90] sm:$0xf]
        %v316 = vld [vmem:[%s212 + $0x94] sm:$0xf]
        %v317 = vld [vmem:[%s212 + $0x98] sm:$0xf]
        %v318 = vld [vmem:[%s212 + $0x9c] sm:$0xf]
        %v319 = vld [vmem:[%s212 + $0xa0] sm:$0xf]
        %v320 = vld [vmem:[%s212 + $0xa4] sm:$0xf]
        %v321 = vld [vmem:[%s212 + $0xa8] sm:$0xf]
        %v322 = vld [vmem:[%s212 + $0xac] sm:$0xf]
        %v323 = vld [vmem:[%s212 + $0xb0] sm:$0xf]
        %v324 = vld [vmem:[%s212 + $0xb4] sm:$0xf]
        %v325 = vld [vmem:[%s212 + $0xb8] sm:$0xf]
        %v326 = vld [vmem:[%s212 + $0xbc] sm:$0xf]
        %v327 = vld [vmem:[%s212 + $0xc0] sm:$0xf]
        %v328 = vld [vmem:[%s212 + $0xc4] sm:$0xf]
        %v329 = vld [vmem:[%s212 + $0xc8] sm:$0xf]
        %v330 = vld [vmem:[%s212 + $0xcc] sm:$0xf]
        %v331 = vld [vmem:[%s212 + $0xd0] sm:$0xf]
        %v332 = vld [vmem:[%s212 + $0xd4] sm:$0xf]
        %v333 = vld [vmem:[%s212 + $0xd8] sm:$0xf]
        %v334 = vld [vmem:[%s212 + $0xdc] sm:$0xf]
        %v335 = vld [vmem:[%s212 + $0xe0] sm:$0xf]
        %v336 = vld [vmem:[%s212 + $0xe4] sm:$0xf]
        %v337 = vld [vmem:[%s212 + $0xe8] sm:$0xf]
        %v338 = vld [vmem:[%s212 + $0xec] sm:$0xf]
        %v339 = vld [vmem:[%s212 + $0xf0] sm:$0xf]
        %v340 = vld [vmem:[%s212 + $0xf4] sm:$0xf]
        %v341 = vld [vmem:[%s212 + $0xf8] sm:$0xf]
        %v342 = vld [vmem:[%s212 + $0xfc] sm:$0xf]
        %v345 = vunpack.c.l.b16 %v277
        %v346 = vunpack.c.h.b16 %v277
        %v347 = vunpack.c.l.b16 %v278
        %v348 = vunpack.c.h.b16 %v278
        %v349 = vpack.c.b16 %v345, %v345
        %v350 = vpack.c.b16 %v346, %v346
        %v351 = vpack.c.b16 %v347, %v347
        %v352 = vpack.c.b16 %v348, %v348
        %v421 = vunpack.c.l.b16 %v279
        %v422 = vunpack.c.l.b16 %v280
        %v423 = vunpack.c.l.b16 %v281
        %v424 = vunpack.c.l.b16 %v282
        %v425 = vunpack.c.l.b16 %v283
        %v426 = vunpack.c.l.b16 %v284
        %v427 = vunpack.c.l.b16 %v285
        %v428 = vunpack.c.l.b16 %v286
        %v429 = vunpack.c.l.b16 %v287
        %v430 = vunpack.c.l.b16 %v288
        %v431 = vunpack.c.l.b16 %v289
        %v432 = vunpack.c.l.b16 %v290
        %v433 = vunpack.c.l.b16 %v291
        %v434 = vunpack.c.l.b16 %v292
        %v435 = vunpack.c.l.b16 %v293
        %v436 = vunpack.c.l.b16 %v294
        %v437 = vunpack.c.l.b16 %v295
        %v438 = vunpack.c.l.b16 %v296
        %v439 = vunpack.c.l.b16 %v297
        %v440 = vunpack.c.l.b16 %v298
        %v441 = vunpack.c.l.b16 %v299
        %v442 = vunpack.c.l.b16 %v300
        %v443 = vunpack.c.l.b16 %v301
        %v444 = vunpack.c.l.b16 %v302
        %v445 = vunpack.c.l.b16 %v303
        %v446 = vunpack.c.l.b16 %v304
        %v447 = vunpack.c.l.b16 %v305
        %v448 = vunpack.c.l.b16 %v306
        %v449 = vunpack.c.l.b16 %v307
        %v450 = vunpack.c.l.b16 %v308
        %v451 = vunpack.c.l.b16 %v309
        %v452 = vunpack.c.l.b16 %v310
        %v453 = vunpack.c.l.b16 %v311
        %v454 = vunpack.c.l.b16 %v312
        %v455 = vunpack.c.l.b16 %v313
        %v456 = vunpack.c.l.b16 %v314
        %v457 = vunpack.c.l.b16 %v315
        %v458 = vunpack.c.l.b16 %v316
        %v459 = vunpack.c.l.b16 %v317
        %v460 = vunpack.c.l.b16 %v318
        %v461 = vunpack.c.l.b16 %v319
        %v462 = vunpack.c.l.b16 %v320
        %v463 = vunpack.c.l.b16 %v321
        %v464 = vunpack.c.l.b16 %v322
        %v465 = vunpack.c.l.b16 %v323
        %v466 = vunpack.c.l.b16 %v324
        %v467 = vunpack.c.l.b16 %v325
        %v468 = vunpack.c.l.b16 %v326
        %v469 = vunpack.c.l.b16 %v327
        %v470 = vunpack.c.l.b16 %v328
        %v471 = vunpack.c.l.b16 %v329
        %v472 = vunpack.c.l.b16 %v330
        %v473 = vunpack.c.l.b16 %v331
        %v474 = vunpack.c.l.b16 %v332
        %v475 = vunpack.c.l.b16 %v333
        %v476 = vunpack.c.l.b16 %v334
        %v477 = vunpack.c.l.b16 %v335
        %v478 = vunpack.c.l.b16 %v336
        %v479 = vunpack.c.l.b16 %v337
        %v480 = vunpack.c.l.b16 %v338
        %v481 = vunpack.c.l.b16 %v339
        %v482 = vunpack.c.l.b16 %v340
        %v483 = vunpack.c.l.b16 %v341
        %v484 = vunpack.c.l.b16 %v342
        %v485 = vpack.c.b16 %v422, %v421
        %v486 = vpack.c.b16 %v424, %v423
        %v487 = vpack.c.b16 %v426, %v425
        %v488 = vpack.c.b16 %v428, %v427
        %v489 = vpack.c.b16 %v430, %v429
        %v490 = vpack.c.b16 %v432, %v431
        %v491 = vpack.c.b16 %v434, %v433
        %v492 = vpack.c.b16 %v436, %v435
        %v493 = vpack.c.b16 %v438, %v437
        %v494 = vpack.c.b16 %v440, %v439
        %v495 = vpack.c.b16 %v442, %v441
        %v496 = vpack.c.b16 %v444, %v443
        %v497 = vpack.c.b16 %v446, %v445
        %v498 = vpack.c.b16 %v448, %v447
        %v499 = vpack.c.b16 %v450, %v449
        %v500 = vpack.c.b16 %v452, %v451
        %v501 = vpack.c.b16 %v454, %v453
        %v502 = vpack.c.b16 %v456, %v455
        %v503 = vpack.c.b16 %v458, %v457
        %v504 = vpack.c.b16 %v460, %v459
        %v505 = vpack.c.b16 %v462, %v461
        %v506 = vpack.c.b16 %v464, %v463
        %v507 = vpack.c.b16 %v466, %v465
        %v508 = vpack.c.b16 %v468, %v467
        %v509 = vpack.c.b16 %v470, %v469
        %v510 = vpack.c.b16 %v472, %v471
        %v511 = vpack.c.b16 %v474, %v473
        %v512 = vpack.c.b16 %v476, %v475
        %v513 = vpack.c.b16 %v478, %v477
        %v514 = vpack.c.b16 %v480, %v479
        %v515 = vpack.c.b16 %v482, %v481
        %v516 = vpack.c.b16 %v484, %v483
        %549 = vmatprep.subr.bf16.mxu0 0
        %550 = vmatpush1.bf16.msra.mxu0 %v492
        %551 = vmatprep.subr.bf16.mxu0 0
        %552 = vmatpush1.bf16.msra.mxu0 %v491
        %553 = vmatprep.subr.bf16.mxu0 0
        %554 = vmatpush1.bf16.msra.mxu0 %v490
        %555 = vmatprep.subr.bf16.mxu0 0
        %556 = vmatpush1.bf16.msra.mxu0 %v489
        %557 = vmatprep.subr.bf16.mxu0 0
        %558 = vmatpush1.bf16.msra.mxu0 %v488
        %559 = vmatprep.subr.bf16.mxu0 0
        %560 = vmatpush1.bf16.msra.mxu0 %v487
        %561 = vmatprep.subr.bf16.mxu0 0
        %562 = vmatpush1.bf16.msra.mxu0 %v486
        %563 = vmatprep.subr.bf16.mxu0 0
        %564 = vmatpush1.bf16.msra.mxu0 %v485
        %565 = vmatprep.subr.bf16.mxu0 0
        %566 = vmatpush2.bf16.msra.mxu0 %v500
        %567 = vmatprep.subr.bf16.mxu0 0
        %568 = vmatpush2.bf16.msra.mxu0 %v499
        %569 = vmatprep.subr.bf16.mxu0 0
        %570 = vmatpush2.bf16.msra.mxu0 %v498
        %571 = vmatprep.subr.bf16.mxu0 0
        %572 = vmatpush2.bf16.msra.mxu0 %v497
        %573 = vmatprep.subr.bf16.mxu0 0
        %574 = vmatpush2.bf16.msra.mxu0 %v496
        %575 = vmatprep.subr.bf16.mxu0 0
        %576 = vmatpush2.bf16.msra.mxu0 %v495
        %577 = vmatprep.subr.bf16.mxu0 0
        %578 = vmatpush2.bf16.msra.mxu0 %v494
        %579 = vmatprep.subr.bf16.mxu0 0
        %580 = vmatpush2.bf16.msra.mxu0 %v493
        %581 = vmatprep.mubr.bf16.mxu0 %v350
        %582 = vmatmul.mubr.bf16.gmra.mxu0 %v349
        %v583 = vpop.f32.mrf.mxu0
        %v584 = vadd.f32 0.0, %v583
        %v585 = vpop.f32.mrf.mxu0
        %v586 = vpop.f32.mrf.mxu0
        %v587 = vpop.f32.mrf.mxu0
        %588 = vdwg.mxu0
        %589 = vmatprep.subr.bf16.mxu0 0
        %590 = vmatpush1.bf16.msra.mxu0 %v508
        %591 = vmatprep.subr.bf16.mxu0 0
        %592 = vmatpush1.bf16.msra.mxu0 %v507
        %593 = vmatprep.subr.bf16.mxu0 0
        %594 = vmatpush1.bf16.msra.mxu0 %v506
        %595 = vmatprep.subr.bf16.mxu0 0
        %596 = vmatpush1.bf16.msra.mxu0 %v505
        %597 = vmatprep.subr.bf16.mxu0 0
        %598 = vmatpush1.bf16.msra.mxu0 %v504
        %599 = vmatprep.subr.bf16.mxu0 0
        %600 = vmatpush1.bf16.msra.mxu0 %v503
        %601 = vmatprep.subr.bf16.mxu0 0
        %602 = vmatpush1.bf16.msra.mxu0 %v502
        %603 = vmatprep.subr.bf16.mxu0 0
        %604 = vmatpush1.bf16.msra.mxu0 %v501
        %605 = vmatprep.subr.bf16.mxu0 0
        %606 = vmatpush2.bf16.msra.mxu0 %v516
        %607 = vmatprep.subr.bf16.mxu0 0
        %608 = vmatpush2.bf16.msra.mxu0 %v515
        %609 = vmatprep.subr.bf16.mxu0 0
        %610 = vmatpush2.bf16.msra.mxu0 %v514
        %611 = vmatprep.subr.bf16.mxu0 0
        %612 = vmatpush2.bf16.msra.mxu0 %v513
        %613 = vmatprep.subr.bf16.mxu0 0
        %614 = vmatpush2.bf16.msra.mxu0 %v512
        %615 = vmatprep.subr.bf16.mxu0 0
        %616 = vmatpush2.bf16.msra.mxu0 %v511
        %617 = vmatprep.subr.bf16.mxu0 0
        %618 = vmatpush2.bf16.msra.mxu0 %v510
        %619 = vmatprep.subr.bf16.mxu0 0
        %620 = vmatpush2.bf16.msra.mxu0 %v509
        %621 = vmatprep.mubr.bf16.mxu0 %v352
        %622 = vmatmul.mubr.bf16.gmra.mxu0 %v351
        %v623 = vpop.f32.mrf.mxu0
        %v624 = vadd.f32 %v584, %v623
        %v625 = vpop.f32.mrf.mxu0
        %v626 = vpop.f32.mrf.mxu0
        %v627 = vpop.f32.mrf.mxu0
        %628 = vdwg.mxu0
        %v629 = vadd.f32 %v276, %v624
        %630 = vst [vmem:[#allocation2] sm:$0xff] %v629
        %p631 = scmp.eq.s32.totalorder %s24, 1
        // Predicated region
        $region41: #{classifier_base_forward.1} parent=31 // pred_check
          %p632 = pneg %p631
        $region42: #{classifier_base_forward.1} parent=31 // pred_check_branch
          %634 = sbr.rel (%p632) target = $region44
        $region43: #{classifier_base_forward.1} parent=31 // pred_region
          %v635 = vld [vmem:[#allocation2] sm:$0xff]
          %v636 = vld [vmem:[%s262] sm:$0x1]
          %v638 = vlaneseq
          %v639 = vshrl.u32 %v638, 7
          %v640 = vsub.s32 0, %v639
          %v641 = vrot.slane %v636, %v640
          %v643 = vadd.f32 %v635, %v641
          %644 = vst [vmem:[%s269] sm:$0xff] %v643
        $region44: #{classifier_base_forward.1} parent=31 // pred_fallthru
          _
        %p645 = scmp.lt.s32.totalorder %s22, 0
        %s646 = scalar_select %p645, %s22, 0
        %p647 = scmp.lt.s32.totalorder %s23, 0
        %s648 = scalar_select %p647, %s23, 0
        %s649 = sadd.s32 %s648, %s646
        %s650 = smul.addr %s649, 8
        %s651 = scalar_lea.vmem %s3, %s650
        // Predicated region
        $region45: #{classifier_base_forward.1} parent=31 // pred_check
          %p652 = pneg %p138
        $region46: #{classifier_base_forward.1} parent=31 // pred_check_branch
          %654 = sbr.rel (%p652) target = $region48
        $region47: #{classifier_base_forward.1} parent=31 // pred_region
          _
        $region48: #{classifier_base_forward.1} parent=31 // pred_fallthru
          _
        // Predicated region
        $region49: #{classifier_base_forward.1} parent=31 // pred_check
          %p655 = pneg %p138
        $region50: #{classifier_base_forward.1} parent=31 // pred_check_branch
          %657 = sbr.rel (%p655) target = $region52
        $region51: #{classifier_base_forward.1} parent=31 // pred_region
          %p658 = scmp.lt.s32.totalorder %s22, 0
          %s659 = scalar_select %p658, %s22, 0
          %p660 = scmp.lt.s32.totalorder %s23, 0
          %s661 = scalar_select %p660, %s23, 0
          %s662 = sadd.s32 %s661, %s659
          %s663 = smul.addr %s662, 8
          %s664 = scalar_lea.vmem %s3, %s663
        $region52: #{classifier_base_forward.1} parent=31 // pred_fallthru
          _
      $region32: #{classifier_base_forward.1} parent=5 // pred_fallthru
        _
      %p665 = scmp.le.s32.totalorder 2, %s12
      // Predicated region
      $region53: #{classifier_base_forward.1} parent=5 // pred_check
        %p666 = pneg %p665
      $region54: #{classifier_base_forward.1} parent=5 // pred_check_branch
        %668 = sbr.rel (%p666) target = $region56
      $region55: #{classifier_base_forward.1} parent=5 // pred_region
        %s669 = ssub.s32 %s12, 2
      $region56: #{classifier_base_forward.1} parent=5 // pred_fallthru
        _
    $region6: #{classifier_base_forward.1} parent=1 // loop_footer
      %s16 = sadd.s32 1, %s12
    $region7: #{classifier_base_forward.1} parent=1 // loop_footer_branch
      %11 = sbr.rel target = $region3
    $region8: #{classifier_base_forward.1} parent=1 // loop_exit
      _
    %670 = vsyncpa [#allocation4], 1
    %s671 = scalar_lea.sflag [#allocation4], 1
    %672 = vsyncpa %s671, 1

</llo_original>
